<compile_context>
chip_gen: v7x
topology: tpu7x:2x2x1
jax: 0.10.0
libtpu: 0.0.40
codegen_flags: <defaults>
</compile_context>

<pallas_src>
import math

import jax
import jax.numpy as jnp
from jax.experimental import pallas as pl
from jax.experimental.pallas import tpu as pltpu


# ----------------------------------------------------------------------------
# Buffer construction (deterministic, mirrors PositionalEncoding.__init__)
# ----------------------------------------------------------------------------
def build_pe(max_len: int, d_model: int) -> jnp.ndarray:
    """Returns pe of shape (max_len, 1, d_model), same as the registered buffer."""
    position = jnp.arange(max_len, dtype=jnp.float32)[:, None]            # (max_len, 1)
    div_term = jnp.exp(
        jnp.arange(0, d_model, 2, dtype=jnp.float32) * (-math.log(10000.0) / d_model)
    )                                                                      # (d_model//2,)
    args = position * div_term                                             # (max_len, d_model//2)
    pe = jnp.zeros((max_len, d_model), dtype=jnp.float32)
    pe = pe.at[:, 0::2].set(jnp.sin(args))
    pe = pe.at[:, 1::2].set(jnp.cos(args))
    return pe[:, None, :]                                                  # (max_len, 1, d_model)


# ----------------------------------------------------------------------------
# Pallas kernels
# ----------------------------------------------------------------------------
def _add_pe_kernel(x_ref, pe_ref, o_ref):
    # x_ref, pe_ref, o_ref: (tile_rows, B*D) -- plain lane-dense elementwise add.
    o_ref[...] = (x_ref[...] + pe_ref[...]).astype(o_ref.dtype)


def _make_add_pe_dropout_kernel(dropout_p: float):
    # Integer threshold: P(bits >= thr) = 1 - p  for uniform uint32 bits.
    thr = min(int(round(dropout_p * 4294967296.0)), 4294967295)
    inv_keep = 1.0 / (1.0 - dropout_p)

    def kernel(x_ref, pe_ref, bits_ref, o_ref):
        y = x_ref[...] + pe_ref[...]
        keep = bits_ref[...] >= jnp.uint32(thr)          # single compare
        o_ref[...] = jnp.where(keep, y * inv_keep, 0.0).astype(o_ref.dtype)

    return kernel


# ----------------------------------------------------------------------------
# Wrapper
# ----------------------------------------------------------------------------
def _pick_tile_rows(S: int, N: int, n_live_buffers: int,
                    bytes_per_elt: int = 4, vmem_budget: int = 8 << 20) -> int:
    """Largest row tile (multiple of 8, or full S) whose double-buffered
    working set stays under a conservative VMEM budget (safe on v5e/v6e/v7x)."""
    per_row = max(N * bytes_per_elt * n_live_buffers, 1)
    max_rows = max(8, vmem_budget // per_row)
    if S <= max_rows:
        return S                      # full extent -> always layout-legal
    return max(8, (max_rows // 8) * 8)  # multiple of 8 sublanes


def positional_encoding(
    x: jnp.ndarray,
    pe_full: jnp.ndarray,
    *,
    dropout_p: float = 0.1,
    training: bool = False,
    rng_key=None,
) -> jnp.ndarray:
    """x: (S, B, D); pe_full: (max_len, 1, D).  Returns (S, B, D)."""
    S, B, D = x.shape
    N = B * D

    # Lane-dense 2-D views (glue): x -> (S, B*D); pe tiled over batch -> (S, B*D).
    x2 = x.reshape(S, N)
    pe2 = jnp.tile(pe_full[:S, 0, :], (1, B)).astype(x.dtype)   # pe2[s, b*D+d] = pe[s, d]

    apply_dropout = bool(training) and float(dropout_p) > 0.0
    n_arrays = 4 if apply_dropout else 3                         # x, pe, (bits), out
    tile_rows = _pick_tile_rows(S, N, 2 * n_arrays)              # x2 double-buffered
    grid = (pl.cdiv(S, tile_rows),)

    row_spec = pl.BlockSpec((tile_rows, N), lambda i: (i, 0))

    if apply_dropout:
        if rng_key is None:
            rng_key = jax.random.PRNGKey(0)
        # Fresh uniform uint32 bits per call; caller threads a new key each step.
        bits = jax.random.bits(rng_key, (S, N), dtype=jnp.uint32)
        kernel = _make_add_pe_dropout_kernel(float(dropout_p))
        in_specs = [row_spec, row_spec, row_spec]
        operands = (x2, pe2, bits)
    else:
        # Inference path: no dropout operand, no unused kernel args.
        kernel = _add_pe_kernel
        in_specs = [row_spec, row_spec]
        operands = (x2, pe2)

    out2 = pl.pallas_call(
        kernel,
        out_shape=jax.ShapeDtypeStruct((S, N), x.dtype),
        grid=grid,
        in_specs=in_specs,
        out_specs=row_spec,
        compiler_params=pltpu.CompilerParams(
            # Row tiles are fully independent -> shard across TCs on v7x.
            dimension_semantics=("parallel",),
        ),
    )(*operands)

    return out2.reshape(S, B, D)


# ----------------------------------------------------------------------------
# Main
# ----------------------------------------------------------------------------
if __name__ == "__main__":
    # Small shapes consistent with the module: seq=8, batch=2, d_model=32.
    S, B, D = 8, 2, 32
    MAX_LEN = 64

    key = jax.random.PRNGKey(0)
    k_x, k_drop = jax.random.split(key)
    x = jax.random.normal(k_x, (S, B, D), dtype=jnp.float32)

    pe_full = build_pe(MAX_LEN, D)
    ref = x + pe_full[:S]

    # Eval mode (dropout = identity): deterministic, check against reference.
    out_eval = positional_encoding(x, pe_full, dropout_p=0.1, training=False)
    out_eval = jax.block_until_ready(out_eval)
    assert out_eval.shape == (S, B, D)
    assert jnp.allclose(out_eval, ref, atol=1e-6, rtol=1e-6), "eval-mode mismatch"

    # Training mode: exercises the in-kernel dropout (threshold compare + select).
    # Exact match with torch's RNG stream is not possible; verify inverted-dropout
    # semantics instead: every element is either 0 or (x+pe)/(1-p).
    p = 0.1
    out_train = positional_encoding(x, pe_full, dropout_p=p, training=True, rng_key=k_drop)
    out_train = jax.block_until_ready(out_train)
    assert out_train.shape == (S, B, D)
    kept_expected = ref / (1.0 - p)
    ok = (out_train == 0.0) | (jnp.abs(out_train - kept_expected) < 1e-5)
    assert bool(jnp.all(ok)), "train-mode dropout semantics mismatch"

    print("KERNEL_OK")
</pallas_src>

<mosaic_0001>
module attributes {stable_mosaic.version = 11 : i64} {
  func.func @_add_pe_kernel(%arg0: i32, %arg1: memref<8x64xf32, #tpu.memory_space<vmem>>, %arg2: memref<8x64xf32, #tpu.memory_space<vmem>>, %arg3: memref<8x64xf32, #tpu.memory_space<vmem>>) attributes {dimension_semantics = [#tpu.dimension_semantics<parallel>], iteration_bounds = array<i64: 1>, scalar_prefetch = 0 : i64, scratch_operands = 0 : i64, tpu.core_type = #tpu.core_type<tc>, window_params = [{transform_indices = @transform_0, window_bounds = array<i64: 8, 64>}, {transform_indices = @transform_1, window_bounds = array<i64: 8, 64>}, {transform_indices = @transform_2, window_bounds = array<i64: 8, 64>}]} {
    %c0 = arith.constant 0 : index
    %c0_0 = arith.constant 0 : index
    %0 = vector.load %arg1[%c0, %c0_0] : memref<8x64xf32, #tpu.memory_space<vmem>>, vector<8x64xf32>
    %c0_1 = arith.constant 0 : index
    %c0_2 = arith.constant 0 : index
    %1 = vector.load %arg2[%c0_1, %c0_2] : memref<8x64xf32, #tpu.memory_space<vmem>>, vector<8x64xf32>
    %2 = arith.addf %0, %1 : vector<8x64xf32>
    %c0_3 = arith.constant 0 : index
    %c0_4 = arith.constant 0 : index
    %3 = vector.load %arg3[%c0_3, %c0_4] : memref<8x64xf32, #tpu.memory_space<vmem>>, vector<8x64xf32>
    tpu.vector_store %arg3[%c0_3, %c0_4], %2 {strides = array<i32>} : memref<8x64xf32, #tpu.memory_space<vmem>>, vector<8x64xf32>,
    return
  }
  func.func @transform_0(%arg0: i32) -> (i32, i32) {
    %c0_i32 = arith.constant 0 : i32
    %c0_i32_0 = arith.constant 0 : i32
    return %arg0, %c0_i32 : i32, i32
  }
  func.func @transform_1(%arg0: i32) -> (i32, i32) {
    %c0_i32 = arith.constant 0 : i32
    %c0_i32_0 = arith.constant 0 : i32
    return %arg0, %c0_i32 : i32, i32
  }
  func.func @transform_2(%arg0: i32) -> (i32, i32) {
    %c0_i32 = arith.constant 0 : i32
    %c0_i32_0 = arith.constant 0 : i32
    return %arg0, %c0_i32 : i32, i32
  }
}

</mosaic_0001>

<llo_original>
// kernel: tpu_custom_call.1
$region0: #{tpu_custom_call.1}
  #allocation0 [shape = 'u32[]', space=smem, size = 0x4, offset = 0x4, fixed_abs, tag = 'smem constant byte address 0x4 - core index']
  #allocation1 [shape = 'u32[144,128]{1,0:T(1,128)}', space=vmem, size = 0x12000, scoped, tag = 'internal scratch']
  %s0 = inlined_call_operand.hbm [shape: f32[8,64], index: 0, kind: input, shape index: {}]
  %s1 = inlined_call_operand.hbm [shape: f32[8,64], index: 1, kind: input, shape index: {}]
  %s2 = inlined_call_operand.hbm [shape: f32[8,64], index: 2, kind: output, shape index: {}]
  %s3 = sld [smem:[#allocation0]]
  $region26: #{tpu_custom_call.1} parent=0
    _
  %s5 = ssub.s32 1, %s3
  %s6 = scalar_select 0, %s5, %s3
  $region1: #{tpu_custom_call.1} parent=0
    #allocation2 [shape = 'u8[4096]{0}', space=vmem, size = 0x1000, scoped, tag = 'input window, operand 0, single buffered']
    #allocation3 [shape = 's32[1]{0}', space=sflag, size = 0x4, scoped, tag = 'scoped memory for tpu_custom_call.1']
    #allocation4 [shape = 's32[1]{0}', space=sflag, size = 0x4, scoped, tag = 'scoped memory for tpu_custom_call.1']
    #allocation5 [shape = 'u8[4096]{0}', space=vmem, size = 0x1000, scoped, tag = 'input window, operand 1, single buffered']
    #allocation6 [shape = 's32[1]{0}', space=sflag, size = 0x4, scoped, tag = 'scoped memory for tpu_custom_call.1']
    #allocation7 [shape = 'u8[4096]{0}', space=vmem, size = 0x1000, scoped, tag = 'output window, operand 0, single buffered']
    %7 = vsyncpa [#allocation3], 0
    %8 = vsyncpa [#allocation6], 0
    %9 = vsyncpa [#allocation4], 0
    // Predicated region
    $region2: #{tpu_custom_call.1} parent=1 // pred_check
      _
    $region3: #{tpu_custom_call.1} parent=1 // pred_check_branch
      %11 = sbr.rel (0) target = $region5
    $region4: #{tpu_custom_call.1} parent=1 // pred_region
      %s13 = ssub.s32 128, 128
      %14 = vsyncadd [#allocation3], %s13
      %s16 = sshll.u32 [#allocation2], 4
      %s17 = int_to_ptr.vmem [resolvable:$true] %s16
      %19 = dma.hbm_to_vmem [thread:$0]  %s0, 128, %s17, [#allocation3]
    $region5: #{tpu_custom_call.1} parent=1 // pred_fallthru
      _
    // Predicated region
    $region6: #{tpu_custom_call.1} parent=1 // pred_check
      _
    $region7: #{tpu_custom_call.1} parent=1 // pred_check_branch
      %21 = sbr.rel (0) target = $region9
    $region8: #{tpu_custom_call.1} parent=1 // pred_region
      %s23 = ssub.s32 128, 128
      %24 = vsyncadd [#allocation6], %s23
      %s26 = sshll.u32 [#allocation5], 4
      %s27 = int_to_ptr.vmem [resolvable:$true] %s26
      %29 = dma.hbm_to_vmem [thread:$0]  %s1, 128, %s27, [#allocation6]
    $region9: #{tpu_custom_call.1} parent=1 // pred_fallthru
      _
    // Predicated region
    $region10: #{tpu_custom_call.1} parent=1 // pred_check
      _
    $region11: #{tpu_custom_call.1} parent=1 // pred_check_branch
      %31 = sbr.rel (0) target = $region13
    $region12: #{tpu_custom_call.1} parent=1 // pred_region
      %32 = dma.done [#allocation3], 128
    $region13: #{tpu_custom_call.1} parent=1 // pred_fallthru
      _
    // Predicated region
    $region14: #{tpu_custom_call.1} parent=1 // pred_check
      _
    $region15: #{tpu_custom_call.1} parent=1 // pred_check_branch
      %34 = sbr.rel (0) target = $region17
    $region16: #{tpu_custom_call.1} parent=1 // pred_region
      %35 = dma.done [#allocation6], 128
    $region17: #{tpu_custom_call.1} parent=1 // pred_fallthru
      _
    %v36 = vld [vmem:[#allocation2] sm:$0xff]
    %v37 = vld [vmem:[#allocation5] sm:$0xff]
    %v38 = vadd.f32 %v36, %v37
    %vm39 = vcmask 523264
    %40 = vst.msk [vmem:[#allocation7] sm:$0xff] %vm39, %v38
    // Predicated region
    $region18: #{tpu_custom_call.1} parent=1 // pred_check
      _
    $region19: #{tpu_custom_call.1} parent=1 // pred_check_branch
      %42 = sbr.rel (0) target = $region21
    $region20: #{tpu_custom_call.1} parent=1 // pred_region
      %s44 = ssub.s32 128, 128
      %45 = vsyncadd [#allocation4], %s44
      %s47 = sshll.u32 [#allocation7], 4
      %s48 = int_to_ptr.vmem [resolvable:$true] %s47
      %50 = dma.vmem_to_hbm [thread:$0]  %s48, 128, %s2, [#allocation4]
    $region21: #{tpu_custom_call.1} parent=1 // pred_fallthru
      _
    // Predicated region
    $region22: #{tpu_custom_call.1} parent=1 // pred_check
      _
    $region23: #{tpu_custom_call.1} parent=1 // pred_check_branch
      %52 = sbr.rel (0) target = $region25
    $region24: #{tpu_custom_call.1} parent=1 // pred_region
      %53 = dma.done [#allocation4], 128
    $region25: #{tpu_custom_call.1} parent=1 // pred_fallthru
      _
    %54 = vsyncpa [#allocation3], 1
    %55 = vsyncpa [#allocation6], 1
    %56 = vsyncpa [#allocation4], 1

</llo_original>
